<compile_context>
chip_gen: v7x
topology: tpu7x:2x2x1
jax: 0.10.0
libtpu: 0.0.40
codegen_flags: <defaults>
</compile_context>

<pallas_src>
import functools
import math

import jax
import jax.numpy as jnp
from jax.experimental import pallas as pl
from jax.experimental.pallas import tpu as pltpu


def _round_up(v, m):
    return ((v + m - 1) // m) * m


def _vmem_capacity_bytes():
    """Generation-aware VMEM capacity; conservative fallback (v7x: 64 MiB/core)."""
    try:
        info = pltpu.get_tpu_info()
        for name in ("vmem_capacity_bytes", "vmem_size_bytes", "vmem_bytes"):
            cap = getattr(info, name, None)
            if cap:
                return int(cap)
    except Exception:
        pass
    return 64 * 1024 * 1024


def _erf(z):
    # Abramowitz & Stegun 7.1.26 rational approximation (max abs err ~1.5e-7);
    # only exp/mul/add/select, lowers cleanly on the TPU VPU/EUP.  PyTorch
    # nn.GELU() is exact-erf GELU; this approximation is inside 1e-3 tolerance.
    a1, a2, a3, a4, a5 = (0.254829592, -0.284496736, 1.421413741,
                          -1.453152027, 1.061405429)
    p = 0.3275911
    s = jnp.where(z >= 0.0, 1.0, -1.0)
    az = jnp.abs(z)
    t = 1.0 / (1.0 + p * az)
    poly = ((((a5 * t + a4) * t + a3) * t + a2) * t + a1) * t
    return s * (1.0 - poly * jnp.exp(-az * az))


# --------------------------------------------------------------------------- #
# Kernel 1: streaming per-graph (and global) segment sums.
# --------------------------------------------------------------------------- #
def sero_segment_sum_kernel(x_ref, batch_ref, partial_ref, *,
                            num_graphs, n_total, tiles_per_split):
    c = pl.program_id(0)   # core-split ("parallel")
    i = pl.program_id(1)   # node-tile within split ("arbitrary")

    @pl.when(i == 0)
    def _init():
        partial_ref[...] = jnp.zeros_like(partial_ref)

    b_pad = partial_ref.shape[0]
    tile_n = x_ref.shape[0]

    # Validity of streamed rows: handles the ragged last tile and any fully
    # out-of-range tile (whose x block index was clamped in the index_map).
    # Zeroing x (not just the mask) also guards against NaN garbage in the
    # out-of-bounds region of the VMEM buffer.
    base = (c * tiles_per_split + i) * tile_n
    iota_n = jax.lax.broadcasted_iota(jnp.int32, (tile_n, 1), 0)
    valid = (base + iota_n) < n_total
    x_tile = jnp.where(valid, x_ref[...], 0)

    # Segment mask built in-kernel from streamed int32 graph ids:
    #   rows 0..B-1 : one-hot graph membership
    #   row  B      : all valid nodes -> accumulates the global x-sum
    #   rows > B    : zero (padding rows)
    bt = batch_ref[...]                                               # (1, tile_n)
    iota_b = jax.lax.broadcasted_iota(jnp.int32, (b_pad, tile_n), 0)  # (B_pad, tile_n)
    onehot = iota_b == bt
    sum_row = (iota_b == num_graphs) & (bt < num_graphs)
    mask = (onehot | sum_row).astype(x_tile.dtype)                    # no f32 upcast of x

    # One MXU matmul per tile: per-graph sums + global sum, f32 accumulation.
    partial_ref[...] += jnp.dot(mask, x_tile, preferred_element_type=jnp.float32)


# --------------------------------------------------------------------------- #
# Kernel 2: tiny epilogue (combine partials, MLP + sigmoid, att * x_mean).
# --------------------------------------------------------------------------- #
def sero_epilogue_kernel(partial_ref, scale_ref, w1_ref, bn_scale_ref, shift_ref,
                         w2_ref, b2_ref, out_ref, att_ref, *, num_graphs):
    acc = jnp.sum(partial_ref[...], axis=0)                # (B_pad, D) f32
    # rows 0..B-1 -> per-graph means (gap); row B -> global mean x.mean(0)
    scaled = acc * scale_ref[...]

    # embed = Linear -> BatchNorm1d(eval) -> GELU; bias + BN folded into scale/shift.
    h = jnp.dot(scaled, w1_ref[...], preferred_element_type=jnp.float32)
    h = h * bn_scale_ref[...] + shift_ref[...]
    h = 0.5 * h * (1.0 + _erf(h * (1.0 / math.sqrt(2.0))))  # exact-erf GELU (approx erf)

    # attend -> sigmoid  => graph attention (B, output_dim == D)
    logits = jnp.dot(h, w2_ref[...], preferred_element_type=jnp.float32) + b2_ref[...]
    att = jax.nn.sigmoid(logits)

    # (x * att.unsqueeze(1)).mean(node_axis) == att * x.mean(axis=0)
    # TODO(synk): Dropout on the attention is inference-mode identity here
    # (training-mode RNG mask not implemented).
    xbar = scaled[num_graphs:num_graphs + 1, :]            # (1, D) global mean
    out_ref[...] = (att * xbar).astype(out_ref.dtype)
    att_ref[...] = att.astype(att_ref.dtype)


# --------------------------------------------------------------------------- #
# Host wrapper.
# --------------------------------------------------------------------------- #
def module_sero_forward(x, batch, params, num_graphs, *, tile_n=None, n_split=2):
    n_total, d = x.shape
    d_in, h_up = params["w1"].shape
    out_dim = params["w2"].shape[1]
    assert out_dim == d, "broadcast in (x * att) requires output_dim == feature dim"
    assert d_in == d

    itemsize = jnp.dtype(x.dtype).itemsize
    sublane = {4: 8, 2: 16, 1: 32}.get(itemsize, 8)
    row_bytes = d * itemsize
    b_pad = _round_up(num_graphs + 1, 8)          # +1 row for the folded global sum

    # ---- generation-aware tile sizing ----------------------------------------
    vmem_cap = _vmem_capacity_bytes()
    if tile_n is None:
        usable = int(vmem_cap * 0.7)
        fixed = 4 * b_pad * d * 4 + (1 << 20)                # partial block + slack
        # 2 pipeline buffers for x + ~1 tile of in-kernel temporaries.
        tile_bytes = min(8 * 1024 * 1024, max(usable - fixed, 2 * 1024 * 1024) // 3)
        tile_n = max(sublane, (tile_bytes // row_bytes) // sublane * sublane)
    tile_n = max(sublane, _round_up(tile_n, sublane))
    # Avoid blocks larger than the node dimension (keeps layouts simple).
    max_tile = max(sublane, (n_total // sublane) * sublane)
    tile_n = min(tile_n, max_tile)

    total_tiles = -(-n_total // tile_n)
    n_split = max(1, min(n_split, total_tiles))   # "parallel" core-split axis
    tiles_per_split = -(-total_tiles // n_split)
    padded_tiles = n_split * tiles_per_split
    n_pad = padded_tiles * tile_n
    last_block = total_tiles - 1

    # ---- cheap host-side glue (only 4 B/node) ---------------------------------
    # Padding nodes get an out-of-range graph id so they match no mask row.
    batch_p = jnp.full((n_pad,), b_pad, jnp.int32).at[:n_total].set(batch.astype(jnp.int32))
    batch_3d = batch_p.reshape(padded_tiles, 1, tile_n)

    # Row scales applied once to the accumulated sums:
    #   rows 0..B-1 -> 1/|graph b| (segment mean), row B -> 1/N_total (global mean).
    counts = jnp.zeros((num_graphs,), jnp.float32).at[batch].add(1.0)
    scale = jnp.zeros((b_pad, 1), jnp.float32)
    scale = scale.at[:num_graphs, 0].set(1.0 / jnp.maximum(counts, 1.0))
    scale = scale.at[num_graphs, 0].set(1.0 / n_total)

    # ---- kernel 1: streaming segment sum --------------------------------------
    seg_kernel = functools.partial(
        sero_segment_sum_kernel, num_graphs=num_graphs, n_total=n_total,
        tiles_per_split=tiles_per_split)

    needed = 3 * tile_n * row_bytes + 4 * b_pad * d * 4 + 4 * tile_n * 4 + (2 << 20)
    vmem_limit = int(min(vmem_cap * 0.85, max(needed, 32 * 1024 * 1024)))

    partial = pl.pallas_call(
        seg_kernel,
        grid=(n_split, tiles_per_split),
        in_specs=[
            # x streamed straight from HBM; fully-OOB tiles clamp to the last
            # real block (their rows are zeroed in-kernel anyway).
            pl.BlockSpec((tile_n, d),
                         lambda c, i: (jnp.minimum(c * tiles_per_split + i, last_block), 0)),
            # per-tile int32 graph ids
            pl.BlockSpec((None, 1, tile_n),
                         lambda c, i: (c * tiles_per_split + i, 0, 0)),
        ],
        out_specs=pl.BlockSpec((None, b_pad, d), lambda c, i: (c, 0, 0)),
        out_shape=jax.ShapeDtypeStruct((n_split, b_pad, d), jnp.float32),
        compiler_params=pltpu.CompilerParams(
            dimension_semantics=("parallel", "arbitrary"),
            vmem_limit_bytes=vmem_limit),
    )(x, batch_3d)

    # ---- parameter folding (Linear bias + BatchNorm eval) ---------------------
    eps = 1e-5
    bn_scale = (params["bn_gamma"] / jnp.sqrt(params["bn_var"] + eps)).astype(jnp.float32)
    shift = ((params["b1"] - params["bn_mean"]) * bn_scale + params["bn_beta"]).astype(jnp.float32)

    # ---- kernel 2: tiny grid-less epilogue (single invocation, weights single-
    # buffered in VMEM, never resident during the streaming loop) ---------------
    epi_kernel = functools.partial(sero_epilogue_kernel, num_graphs=num_graphs)
    epi_needed = (2 * d * h_up + n_split * b_pad * d + 8 * b_pad * d) * 4 + (4 << 20)
    epi_limit = int(min(vmem_cap * 0.85, max(epi_needed, 32 * 1024 * 1024)))

    out_p, att_p = pl.pallas_call(
        epi_kernel,
        out_shape=(jax.ShapeDtypeStruct((b_pad, d), x.dtype),
                   jax.ShapeDtypeStruct((b_pad, d), x.dtype)),
        compiler_params=pltpu.CompilerParams(vmem_limit_bytes=epi_limit),
    )(partial, scale,
      params["w1"].astype(jnp.float32),
      bn_scale.reshape(1, h_up), shift.reshape(1, h_up),
      params["w2"].astype(jnp.float32),
      params["b2"].reshape(1, out_dim).astype(jnp.float32))

    return out_p[:num_graphs], att_p[:num_graphs]


# --------------------------------------------------------------------------- #
# Parameters / pure-JAX reference / test.
# --------------------------------------------------------------------------- #
def init_params(key, hidden_dim, output_dim, upscale=1.0):
    h_up = round(upscale * hidden_dim)
    k1, k2, k3, k4 = jax.random.split(key, 4)
    bound1 = 1.0 / math.sqrt(hidden_dim)
    bound2 = 1.0 / math.sqrt(h_up)
    return dict(
        w1=jax.random.uniform(k1, (hidden_dim, h_up), jnp.float32, -bound1, bound1),
        b1=jax.random.uniform(k2, (h_up,), jnp.float32, -bound1, bound1),
        bn_gamma=jnp.ones((h_up,), jnp.float32),
        bn_beta=jnp.zeros((h_up,), jnp.float32),
        bn_mean=jnp.zeros((h_up,), jnp.float32),
        bn_var=jnp.ones((h_up,), jnp.float32),
        w2=jax.random.uniform(k3, (h_up, output_dim), jnp.float32, -bound2, bound2),
        b2=jax.random.uniform(k4, (output_dim,), jnp.float32, -bound2, bound2),
    )


def module_sero_reference(x, batch, params, num_graphs):
    # Pure-JAX reference matching the PyTorch eval-mode forward.
    hp = jax.lax.Precision.HIGHEST
    onehot = (batch[None, :] == jnp.arange(num_graphs, dtype=batch.dtype)[:, None])
    onehot = onehot.astype(jnp.float32)
    counts = jnp.maximum(onehot.sum(axis=1, keepdims=True), 1.0)
    readout = jnp.matmul(onehot, x.astype(jnp.float32), precision=hp) / counts
    eps = 1e-5
    h = jnp.dot(readout, params["w1"], precision=hp) + params["b1"]
    h = (h - params["bn_mean"]) / jnp.sqrt(params["bn_var"] + eps)
    h = h * params["bn_gamma"] + params["bn_beta"]
    h = jax.nn.gelu(h, approximate=False)                  # exact-erf GELU
    att = jax.nn.sigmoid(jnp.dot(h, params["w2"], precision=hp) + params["b2"])
    out = (x[None, :, :].astype(jnp.float32) * att[:, None, :]).mean(axis=1)
    return out.astype(x.dtype), att.astype(x.dtype)


if __name__ == "__main__":
    # 3 graphs with uneven sizes so segment masks / counts are exercised.
    graph_sizes = (5, 8, 6)
    B = len(graph_sizes)
    N_TOTAL = sum(graph_sizes)        # 19 nodes
    HIDDEN = 32                       # hidden_dim (feature dim of x)
    OUTPUT = 32                       # output_dim (must equal feature dim)

    key = jax.random.PRNGKey(0)
    kx, kp = jax.random.split(key)
    x = jax.random.normal(kx, (N_TOTAL, HIDDEN), jnp.float32)
    batch = jnp.concatenate(
        [jnp.full((n,), g, jnp.int32) for g, n in enumerate(graph_sizes)])
    params = init_params(kp, HIDDEN, OUTPUT, upscale=1.0)

    out_ref, att_ref = module_sero_reference(x, batch, params, B)

    # Forced small tile: multi-tile grid, ragged last tile, and a fully
    # out-of-range (clamped) tile on the second core split.
    out, att = module_sero_forward(x, batch, params, B, tile_n=8)
    jax.block_until_ready((out, att))
    assert out.shape == (B, HIDDEN) and att.shape == (B, OUTPUT)
    # 1e-3 tolerance absorbs MXU f32 matmul-precision differences vs XLA reference.
    assert jnp.allclose(out, out_ref, atol=1e-3, rtol=1e-3)
    assert jnp.allclose(att, att_ref, atol=1e-3, rtol=1e-3)

    # Default (generation-aware) tile-selection path.
    out2, att2 = module_sero_forward(x, batch, params, B)
    jax.block_until_ready((out2, att2))
    assert jnp.allclose(out2, out_ref, atol=1e-3, rtol=1e-3)
    assert jnp.allclose(att2, att_ref, atol=1e-3, rtol=1e-3)

    print("KERNEL_OK")
</pallas_src>

<mosaic_0001>
module attributes {stable_mosaic.version = 11 : i64} {
  func.func @sero_segment_sum_kernel(%arg0: i32, %arg1: i32, %arg2: memref<8x32xf32, #tpu.memory_space<vmem>>, %arg3: memref<1x1x8xi32, #tpu.memory_space<vmem>>, %arg4: memref<1x8x32xf32, #tpu.memory_space<vmem>>) attributes {dimension_semantics = [#tpu.dimension_semantics<parallel>, #tpu.dimension_semantics<arbitrary>], iteration_bounds = array<i64: 2, 2>, scalar_prefetch = 0 : i64, scratch_operands = 0 : i64, tpu.core_type = #tpu.core_type<tc>, window_params = [{transform_indices = @transform_0, window_bounds = array<i64: 8, 32>}, {transform_indices = @transform_1, window_bounds = array<i64: 1, 1, 8>}, {transform_indices = @transform_2, window_bounds = array<i64: 1, 8, 32>}]} {
    %c0_i32 = arith.constant 0 : i32
    %0 = arith.cmpi eq, %arg1, %c0_i32 : i32
    %1 = arith.extui %0 : i1 to i32
    %c0_i32_0 = arith.constant 0 : i32
    %2 = arith.cmpi ne, %1, %c0_i32_0 : i32
    scf.if %2 {
      %cst_13 = arith.constant 0.000000e+00 : f32
      %38 = vector.broadcast %cst_13 : f32 to vector<8x32xf32>
      %c0_14 = arith.constant 0 : index
      %c0_15 = arith.constant 0 : index
      %c0_16 = arith.constant 0 : index
      %39 = vector.load %arg4[%c0_14, %c0_15, %c0_16] : memref<1x8x32xf32, #tpu.memory_space<vmem>>, vector<1x8x32xf32>
      %40 = vector.shape_cast %39 : vector<1x8x32xf32> to vector<8x32xf32>
      %41 = vector.shape_cast %38 : vector<8x32xf32> to vector<1x8x32xf32>
      tpu.vector_store %arg4[%c0_14, %c0_15, %c0_16], %41 {strides = array<i32>} : memref<1x8x32xf32, #tpu.memory_space<vmem>>, vector<1x8x32xf32>,
    } else {
    }
    %c2_i32 = arith.constant 2 : i32
    %3 = arith.muli %arg0, %c2_i32 : i32
    %4 = arith.addi %3, %arg1 : i32
    %c8_i32 = arith.constant 8 : i32
    %5 = arith.muli %4, %c8_i32 : i32
    %6 = tpu.iota {dimensions = array<i32: 0>} : vector<8x1xi32>
    %7 = vector.broadcast %5 : i32 to vector<8x1xi32>
    %8 = arith.addi %7, %6 : vector<8x1xi32>
    %c19_i32 = arith.constant 19 : i32
    %9 = vector.broadcast %c19_i32 : i32 to vector<8x1xi32>
    %10 = arith.cmpi slt, %8, %9 : vector<8x1xi32>
    %c0 = arith.constant 0 : index
    %c0_1 = arith.constant 0 : index
    %11 = vector.load %arg2[%c0, %c0_1] : memref<8x32xf32, #tpu.memory_space<vmem>>, vector<8x32xf32>
    %c0_i32_2 = arith.constant 0 : i32
    %12 = arith.sitofp %c0_i32_2 : i32 to f32
    %13 = vector.shape_cast %10 : vector<8x1xi1> to vector<8x1xi1>
    %14 = vector.broadcast %13 : vector<8x1xi1> to vector<8x32xi1>
    %15 = vector.broadcast %12 : f32 to vector<8x32xf32>
    %16 = arith.select %14, %11, %15 : vector<8x32xi1>, vector<8x32xf32>
    %c0_3 = arith.constant 0 : index
    %c0_4 = arith.constant 0 : index
    %c0_5 = arith.constant 0 : index
    %17 = vector.load %arg3[%c0_3, %c0_4, %c0_5] : memref<1x1x8xi32, #tpu.memory_space<vmem>>, vector<1x1x8xi32>
    %18 = vector.shape_cast %17 : vector<1x1x8xi32> to vector<1x8xi32>
    %19 = tpu.iota {dimensions = array<i32: 0>} : vector<8x8xi32>
    %20 = vector.broadcast %18 : vector<1x8xi32> to vector<8x8xi32>
    %21 = arith.cmpi eq, %19, %20 : vector<8x8xi32>
    %c3_i32 = arith.constant 3 : i32
    %22 = vector.broadcast %c3_i32 : i32 to vector<8x8xi32>
    %23 = arith.cmpi eq, %19, %22 : vector<8x8xi32>
    %c3_i32_6 = arith.constant 3 : i32
    %24 = vector.broadcast %c3_i32_6 : i32 to vector<1x8xi32>
    %25 = arith.cmpi slt, %18, %24 : vector<1x8xi32>
    %26 = vector.broadcast %25 : vector<1x8xi1> to vector<8x8xi1>
    %27 = arith.andi %23, %26 : vector<8x8xi1>
    %28 = arith.ori %21, %27 : vector<8x8xi1>
    %29 = arith.extui %28 : vector<8x8xi1> to vector<8x8xi32>
    %30 = arith.sitofp %29 : vector<8x8xi32> to vector<8x8xf32>
    %c0_7 = arith.constant 0 : index
    %c0_8 = arith.constant 0 : index
    %c0_9 = arith.constant 0 : index
    %31 = vector.load %arg4[%c0_7, %c0_8, %c0_9] : memref<1x8x32xf32, #tpu.memory_space<vmem>>, vector<1x8x32xf32>
    %32 = vector.shape_cast %31 : vector<1x8x32xf32> to vector<8x32xf32>
    %cst = arith.constant dense<0.000000e+00> : vector<8x32xf32>
    %33 = tpu.matmul %30, %16, %cst {dimension_numbers = #tpu.dot_dimension_numbers<[1], [0], [0], [1], [0, 0, 1, 1], [], []>} : vector<8x8xf32>, vector<8x32xf32>, vector<8x32xf32> -> vector<8x32xf32>
    %34 = arith.addf %32, %33 : vector<8x32xf32>
    %c0_10 = arith.constant 0 : index
    %c0_11 = arith.constant 0 : index
    %c0_12 = arith.constant 0 : index
    %35 = vector.load %arg4[%c0_10, %c0_11, %c0_12] : memref<1x8x32xf32, #tpu.memory_space<vmem>>, vector<1x8x32xf32>
    %36 = vector.shape_cast %35 : vector<1x8x32xf32> to vector<8x32xf32>
    %37 = vector.shape_cast %34 : vector<8x32xf32> to vector<1x8x32xf32>
    tpu.vector_store %arg4[%c0_10, %c0_11, %c0_12], %37 {strides = array<i32>} : memref<1x8x32xf32, #tpu.memory_space<vmem>>, vector<1x8x32xf32>,
    return
  }
  func.func @transform_0(%arg0: i32, %arg1: i32) -> (i32, i32) {
    %c2_i32 = arith.constant 2 : i32
    %0 = arith.muli %arg0, %c2_i32 : i32
    %1 = arith.addi %0, %arg1 : i32
    %c2_i32_0 = arith.constant 2 : i32
    %2 = arith.minsi %1, %c2_i32_0 : i32
    %c0_i32 = arith.constant 0 : i32
    %c0_i32_1 = arith.constant 0 : i32
    return %2, %c0_i32 : i32, i32
  }
  func.func @transform_1(%arg0: i32, %arg1: i32) -> (i32, i32, i32) {
    %c2_i32 = arith.constant 2 : i32
    %0 = arith.muli %arg0, %c2_i32 : i32
    %1 = arith.addi %0, %arg1 : i32
    %c0_i32 = arith.constant 0 : i32
    %c0_i32_0 = arith.constant 0 : i32
    %c0_i32_1 = arith.constant 0 : i32
    return %1, %c0_i32, %c0_i32_0 : i32, i32, i32
  }
  func.func @transform_2(%arg0: i32, %arg1: i32) -> (i32, i32, i32) {
    %c0_i32 = arith.constant 0 : i32
    %c0_i32_0 = arith.constant 0 : i32
    %c0_i32_1 = arith.constant 0 : i32
    return %arg0, %c0_i32, %c0_i32_0 : i32, i32, i32
  }
}

</mosaic_0001>

<llo_original>
// kernel: tpu_custom_call.1
$region0: #{tpu_custom_call.1}
  #allocation0 [shape = 'u32[]', space=smem, size = 0x4, offset = 0x4, fixed_abs, tag = 'smem constant byte address 0x4 - core index']
  #allocation1 [shape = 'u32[144,128]{1,0:T(1,128)}', space=vmem, size = 0x12000, scoped, tag = 'internal scratch']
  %s0 = inlined_call_operand.hbm [shape: f32[19,32], index: 0, kind: input, shape index: {}]
  %s1 = inlined_call_operand.hbm [shape: s32[4,1,8], index: 1, kind: input, shape index: {}]
  %s2 = inlined_call_operand.hbm [shape: f32[2,8,32], index: 2, kind: output, shape index: {}]
  %s3 = sld [smem:[#allocation0]]
  $region53: #{tpu_custom_call.1} parent=0
    _
  %s5 = ssub.s32 1, %s3
  %s6 = scalar_select 0, %s5, %s3
  $region1: #{tpu_custom_call.1} parent=0
    #allocation2 [shape = 'u8[8192]{0}', space=vmem, size = 0x2000, scoped, tag = 'input window, operand 0']
    #allocation3 [shape = 's32[2]{0}', space=sflag, size = 0x8, scoped, tag = 'scoped memory for tpu_custom_call.1']
    #allocation4 [shape = 's32[2]{0}', space=sflag, size = 0x8, scoped, tag = 'scoped memory for tpu_custom_call.1']
    #allocation5 [shape = 'u8[1024]{0}', space=vmem, size = 0x400, scoped, tag = 'input window, operand 1']
    #allocation6 [shape = 's32[2]{0}', space=sflag, size = 0x8, scoped, tag = 'scoped memory for tpu_custom_call.1']
    #allocation7 [shape = 'u8[8192]{0}', space=vmem, size = 0x2000, scoped, tag = 'output window, operand 0']
    %7 = vsyncpa [#allocation3], 0
    %s8 = scalar_lea.sflag [#allocation3], 1
    %9 = vsyncpa %s8, 0
    %10 = vsyncpa [#allocation6], 0
    %s11 = scalar_lea.sflag [#allocation6], 1
    %12 = vsyncpa %s11, 0
    %13 = vsyncpa [#allocation4], 0
    %s14 = scalar_lea.sflag [#allocation4], 1
    %15 = vsyncpa %s14, 0
    loop: start=0, step=1, limit=6
    $region2: #{tpu_custom_call.1} parent=1 // loop_pre_header
      _
    $region3: #{tpu_custom_call.1} parent=1 // loop_header
      %s17 = sphi 0, %s21
      %p18 = scmp.ge.s32.totalorder %s17, 6
      %s24 = sphi 0, %s36
      %s25 = sphi 0, %s32
      %s26 = sphi 0, %s24
      %s27 = sphi 0, %s25
      %s28 = sphi 0, %s26
      %s29 = sphi 0, %s27
      %s47 = sphi 0, %s49
      %s50 = sphi 0, %s47
      %s51 = sphi 0, %s50
      %s67 = sphi 0, %s51
      %s77 = sphi 0, %s79
      %s80 = sphi 0, %s77
      %s81 = sphi 0, %s80
      %s97 = sphi 0, %s81
      %s103 = sphi 0, %s105
      %s106 = sphi 0, %s103
      %s107 = sphi 0, %s106
      %s123 = sphi 0, %s107
    $region4: #{tpu_custom_call.1} parent=1 // loop_header_branch
      %20 = sbr.rel (%p18) target = $region8
    $region5: #{tpu_custom_call.1} parent=1 // loop_body
      %s22 = ssub.s32 %s17, 1
      %s23 = ssub.s32 %s17, 2
      %s30 = sadd.s32 1, %s25
      %p31 = scmp.ge.s32.totalorder %s30, 2
      %s32 = scalar_select %p31, 0, %s30
      %s33 = sadd.s32 1, %s24
      %s34 = scalar_select %p31, %s33, %s24
      %p35 = scmp.ge.s32.totalorder %s34, 2
      %s36 = scalar_select %p35, 0, %s34
      %s37 = smul.u32 %s24, 2
      %s38 = sadd.s32 %s37, %s25
      %p39 = scmp.lt.s32.totalorder %s38, 2
      %s40 = scalar_select %p39, %s38, 2
      %s41 = smul.u32 %s36, 2
      %s42 = sadd.s32 %s41, %s32
      %p43 = scmp.lt.s32.totalorder %s42, 2
      %s44 = scalar_select %p43, %s42, 2
      %s45 = ssub.s32 %s40, %s44
      %p46 = scmp.eq.s32.totalorder %s45, 0
      %s48 = sadd.s32 %s47, 1
      %s49 = scalar_select %p46, %s47, %s48
      %p52 = pneg %p46
      %p53 = scmp.eq.s32.totalorder %s17, 3
      %p54 = por %p52, %p53
      %p55 = scmp.ne.s32.totalorder %s47, %s50
      %p56 = scmp.eq.s32.totalorder %s17, 0
      %p57 = por %p55, %p56
      %p58 = scmp.ne.s32.totalorder %s47, %s50
      %p59 = scmp.eq.s32.totalorder %s22, 3
      %p60 = por %p58, %p59
      %p61 = scmp.ne.s32.totalorder %s50, %s51
      %p62 = scmp.eq.s32.totalorder %s22, 0
      %p63 = por %p61, %p62
      %p64 = scmp.ne.s32.totalorder %s50, %s51
      %p65 = scmp.eq.s32.totalorder %s23, 3
      %p66 = por %p64, %p65
      %p68 = scmp.ne.s32.totalorder %s51, %s67
      %p69 = scmp.eq.s32.totalorder %s23, 0
      %p70 = por %p68, %p69
      %s71 = smul.u32 %s24, 2
      %s72 = sadd.s32 %s71, %s25
      %s73 = smul.u32 %s36, 2
      %s74 = sadd.s32 %s73, %s32
      %s75 = ssub.s32 %s72, %s74
      %p76 = scmp.eq.s32.totalorder %s75, 0
      %s78 = sadd.s32 %s77, 1
      %s79 = scalar_select %p76, %s77, %s78
      %p82 = pneg %p76
      %p83 = scmp.eq.s32.totalorder %s17, 3
      %p84 = por %p82, %p83
      %p85 = scmp.ne.s32.totalorder %s77, %s80
      %p86 = scmp.eq.s32.totalorder %s17, 0
      %p87 = por %p85, %p86
      %p88 = scmp.ne.s32.totalorder %s77, %s80
      %p89 = scmp.eq.s32.totalorder %s22, 3
      %p90 = por %p88, %p89
      %p91 = scmp.ne.s32.totalorder %s80, %s81
      %p92 = scmp.eq.s32.totalorder %s22, 0
      %p93 = por %p91, %p92
      %p94 = scmp.ne.s32.totalorder %s80, %s81
      %p95 = scmp.eq.s32.totalorder %s23, 3
      %p96 = por %p94, %p95
      %p98 = scmp.ne.s32.totalorder %s81, %s97
      %p99 = scmp.eq.s32.totalorder %s23, 0
      %p100 = por %p98, %p99
      %s101 = ssub.s32 %s24, %s36
      %p102 = scmp.eq.s32.totalorder %s101, 0
      %s104 = sadd.s32 %s103, 1
      %s105 = scalar_select %p102, %s103, %s104
      %p108 = pneg %p102
      %p109 = scmp.eq.s32.totalorder %s17, 3
      %p110 = por %p108, %p109
      %p111 = scmp.ne.s32.totalorder %s103, %s106
      %p112 = scmp.eq.s32.totalorder %s17, 0
      %p113 = por %p111, %p112
      %p114 = scmp.ne.s32.totalorder %s103, %s106
      %p115 = scmp.eq.s32.totalorder %s22, 3
      %p116 = por %p114, %p115
      %p117 = scmp.ne.s32.totalorder %s106, %s107
      %p118 = scmp.eq.s32.totalorder %s22, 0
      %p119 = por %p117, %p118
      %p120 = scmp.ne.s32.totalorder %s106, %s107
      %p121 = scmp.eq.s32.totalorder %s23, 3
      %p122 = por %p120, %p121
      %p124 = scmp.ne.s32.totalorder %s107, %s123
      %p125 = scmp.eq.s32.totalorder %s23, 0
      %p126 = por %p124, %p125
      %p127 = scmp.le.s32.totalorder 1, %s17
      %p128 = scmp.lt.s32.totalorder %s17, 5
      %p129 = pnand %p127, %p128
      %p130 = pneg %p129
      // Predicated region
      $region9: #{tpu_custom_call.1} parent=5 // pred_check
        _
      $region10: #{tpu_custom_call.1} parent=5 // pred_check_branch
        %132 = sbr.rel (%p129) target = $region12
      $region11: #{tpu_custom_call.1} parent=5 // pred_region
        %s133 = ssub.s32 %s17, 1
      $region12: #{tpu_custom_call.1} parent=5 // pred_fallthru
        _
      %p134 = scmp.lt.s32.totalorder %s17, 4
      // Predicated region
      $region13: #{tpu_custom_call.1} parent=5 // pred_check
        %p135 = pneg %p134
      $region14: #{tpu_custom_call.1} parent=5 // pred_check_branch
        %137 = sbr.rel (%p135) target = $region16
      $region15: #{tpu_custom_call.1} parent=5 // pred_region
        // Predicated region
        $region17: #{tpu_custom_call.1} parent=15 // pred_check
          %p138 = pneg %p57
        $region18: #{tpu_custom_call.1} parent=15 // pred_check_branch
          %140 = sbr.rel (%p138) target = $region20
        $region19: #{tpu_custom_call.1} parent=15 // pred_region
          %s141 = sand.u32 %s47, 1
          %s142 = scalar_lea.sflag [#allocation3], %s141
          %s143 = sand.u32 %s47, 1
          %s144 = smul.addr %s143, 8
          %s145 = scalar_lea.vmem [#allocation2], %s144
          %s146 = smul.u32 %s24, 2
          %s147 = sadd.s32 %s146, %s25
          %p148 = scmp.lt.s32.totalorder %s147, 2
          %s149 = scalar_select %p148, %s147, 2
          %s151 = ssub.s32 128, 128
          %152 = vsyncadd %s142, %s151
          %s153 = smul.addr %s149, 128
          %s154 = scalar_lea.hbm %s0, %s153
          %s156 = sshll.u32 %s145, 4
          %s157 = int_to_ptr.vmem [resolvable:$true] %s156
          %159 = dma.hbm_to_vmem [thread:$0]  %s154, 128, %s157, %s142
        $region20: #{tpu_custom_call.1} parent=15 // pred_fallthru
          _
        // Predicated region
        $region21: #{tpu_custom_call.1} parent=15 // pred_check
          %p160 = pneg %p87
        $region22: #{tpu_custom_call.1} parent=15 // pred_check_branch
          %162 = sbr.rel (%p160) target = $region24
        $region23: #{tpu_custom_call.1} parent=15 // pred_region
          %s163 = sand.u32 %s77, 1
          %s164 = scalar_lea.sflag [#allocation6], %s163
          %s165 = sand.u32 %s77, 1
          %s166 = scalar_lea.vmem [#allocation5], %s165
          %s167 = smul.u32 %s24, 2
          %s168 = sadd.s32 %s167, %s25
          %s170 = ssub.s32 16, 16
          %171 = vsyncadd %s164, %s170
          %s172 = smul.addr %s168, 16
          %s173 = scalar_lea.hbm %s1, %s172
          %s175 = sshll.u32 %s166, 4
          %s176 = int_to_ptr.vmem [resolvable:$true] %s175
          %178 = dma.hbm_to_vmem [thread:$0]  %s173, 16, %s176, %s164
        $region24: #{tpu_custom_call.1} parent=15 // pred_fallthru
          _
      $region16: #{tpu_custom_call.1} parent=5 // pred_fallthru
        _
      %p179 = scmp.le.s32.totalorder 1, %s17
      %p180 = scmp.lt.s32.totalorder %s17, 5
      %p181 = pnand %p179, %p180
      %p182 = pneg %p181
      // Predicated region
      $region25: #{tpu_custom_call.1} parent=5 // pred_check
        _
      $region26: #{tpu_custom_call.1} parent=5 // pred_check_branch
        %184 = sbr.rel (%p181) target = $region28
      $region27: #{tpu_custom_call.1} parent=5 // pred_region
        %s185 = ssub.s32 %s17, 1
        %s186 = sand.u32 %s50, 1
        %s187 = scalar_lea.sflag [#allocation3], %s186
        %s188 = sand.u32 %s50, 1
        %s189 = smul.addr %s188, 8
        %s190 = scalar_lea.vmem [#allocation2], %s189
        // Predicated region
        $region29: #{tpu_custom_call.1} parent=27 // pred_check
          %p191 = pneg %p63
        $region30: #{tpu_custom_call.1} parent=27 // pred_check_branch
          %193 = sbr.rel (%p191) target = $region32
        $region31: #{tpu_custom_call.1} parent=27 // pred_region
          %194 = dma.done %s187, 128
        $region32: #{tpu_custom_call.1} parent=27 // pred_fallthru
          _
        %s195 = sand.u32 %s80, 1
        %s196 = scalar_lea.sflag [#allocation6], %s195
        %s197 = sand.u32 %s80, 1
        %s198 = scalar_lea.vmem [#allocation5], %s197
        // Predicated region
        $region33: #{tpu_custom_call.1} parent=27 // pred_check
          %p199 = pneg %p93
        $region34: #{tpu_custom_call.1} parent=27 // pred_check_branch
          %201 = sbr.rel (%p199) target = $region36
        $region35: #{tpu_custom_call.1} parent=27 // pred_region
          %202 = dma.done %s196, 16
        $region36: #{tpu_custom_call.1} parent=27 // pred_fallthru
          _
        %s203 = sand.u32 %s50, 1
        %s204 = scalar_lea.sflag [#allocation3], %s203
        %s205 = sand.u32 %s50, 1
        %s206 = smul.addr %s205, 8
        %s207 = scalar_lea.vmem [#allocation2], %s206
        %p208 = pneg %p63
        %p209 = pneg %p60
        %s210 = sand.u32 %s80, 1
        %s211 = scalar_lea.sflag [#allocation6], %s210
        %s212 = sand.u32 %s80, 1
        %s213 = scalar_lea.vmem [#allocation5], %s212
        %p214 = pneg %p93
        %p215 = pneg %p90
        %p216 = pneg %p119
        %p217 = pneg %p116
        %s218 = sand.u32 %s106, 1
        %s219 = scalar_lea.sflag [#allocation4], %s218
        %s220 = sand.u32 %s106, 1
        %s221 = smul.addr %s220, 8
        %s222 = scalar_lea.vmem [#allocation7], %s221
        %s223 = smul.u32 %s26, 2
        %s224 = sadd.s32 %s223, %s27
        %p225 = scmp.lt.s32.totalorder %s224, 2
        %s226 = scalar_select %p225, %s224, 2
        %s227 = smul.u32 %s26, 2
        %s228 = sadd.s32 %s227, %s27
        %p229 = scmp.eq.s32.totalorder %s27, 0
        // Predicated region
        $region37: #{tpu_custom_call.1} parent=27 // pred_check
          %p230 = pneg %p229
        $region38: #{tpu_custom_call.1} parent=27 // pred_check_branch
          %232 = sbr.rel (%p230) target = $region40
        $region39: #{tpu_custom_call.1} parent=27 // pred_region
          %vm233 = vcmask 261120
          %234 = vst.msk [vmem:[%s222] sm:$0xff] %vm233, 0.0
        $region40: #{tpu_custom_call.1} parent=27 // pred_fallthru
          _
        %s235 = smul.u32 %s26, 2
        %s236 = sadd.s32 %s235, %s27
        %s237 = smul.u32 %s236, 8
        %v238 = vlaneseq
        %v239 = vshrl.u32 %v238, 7
        %v240 = vstv %s237
        %v241 = vadd.s32 %v240, %v239
        %vm242 = vcmp.lt.s32.totalorder %v241, 19
        %v243 = vld [vmem:[%s190] sm:$0xff]
        %v244 = vsel %vm242, 1, 0
        %vm245 = vcmp.eq.s32.totalorder %v244, 1
        %v246 = vsel %vm245, %v243, 0.0
        %v247 = vld [vmem:[%s198] sm:$0x1]
        %v248 = vlaneseq
        %v249 = vshrl.u32 %v248, 7
        %v250 = vsub.s32 0, %v249
        %v251 = vrot.slane %v247, %v250
        %vm252 = vcmp.eq.s32.totalorder %v239, %v251
        %vm253 = vcmp.eq.s32.totalorder %v239, 3
        %vm254 = vcmp.lt.s32.totalorder %v247, 3
        %v255 = vsel %vm254, 1, 0
        %v256 = vlaneseq
        %v257 = vshrl.u32 %v256, 7
        %v258 = vsub.s32 0, %v257
        %v259 = vrot.slane %v255, %v258
        %vm260 = vcmp.eq.s32.totalorder %v259, 1
        %vm261 = vmand %vm253, %vm260
        %vm262 = vmor %vm252, %vm261
        %v263 = vsel %vm262, 1, 0
        %v264 = vcvt.s32.f32 %v263
        %v265 = vld [vmem:[%s222] sm:$0xff]
        %vm266 = vcmask 64512
        %v268 = vsel %vm266, %v264, 0
        %270 = vmatprep.subr.mxu0 0.0
        %271 = vmatpush1.msra.mxu0 %v246
        %272 = vmatprep.subr.mxu0 0.0
        %273 = vmatpush1.msra.mxu0 0.0
        %274 = vmatprep.subr.mxu0 0.0
        %275 = vmatpush1.msra.mxu0 0.0
        %276 = vmatprep.subr.mxu0 0.0
        %277 = vmatpush1.msra.mxu0 0.0
        %278 = vmatprep.subr.mxu0 0.0
        %279 = vmatpush1.msra.mxu0 0.0
        %280 = vmatprep.subr.mxu0 0.0
        %281 = vmatpush1.msra.mxu0 0.0
        %282 = vmatprep.subr.mxu0 0.0
        %283 = vmatpush1.msra.mxu0 0.0
        %284 = vmatprep.subr.mxu0 0.0
        %285 = vmatpush1.msra.mxu0 0.0
        %286 = vmatprep.subr.mxu0 0.0
        %287 = vmatpush1.msra.mxu0 0.0
        %288 = vmatprep.subr.mxu0 0.0
        %289 = vmatpush1.msra.mxu0 0.0
        %290 = vmatprep.subr.mxu0 0.0
        %291 = vmatpush1.msra.mxu0 0.0
        %292 = vmatprep.subr.mxu0 0.0
        %293 = vmatpush1.msra.mxu0 0.0
        %294 = vmatprep.subr.mxu0 0.0
        %295 = vmatpush1.msra.mxu0 0.0
        %296 = vmatprep.subr.mxu0 0.0
        %297 = vmatpush1.msra.mxu0 0.0
        %298 = vmatprep.subr.mxu0 0.0
        %299 = vmatpush1.msra.mxu0 0.0
        %300 = vmatprep.subr.mxu0 0.0
        %301 = vmatpush1.msra.mxu0 0.0
        %302 = vmatprep.subr.mxu0 0.0
        %303 = vmatpush1.msra.mxu0 0.0
        %304 = vmatprep.subr.mxu0 0.0
        %305 = vmatpush1.msra.mxu0 0.0
        %306 = vmatprep.subr.mxu0 0.0
        %307 = vmatpush1.msra.mxu0 0.0
        %308 = vmatprep.subr.mxu0 0.0
        %309 = vmatpush1.msra.mxu0 0.0
        %310 = vmatprep.subr.mxu0 0.0
        %311 = vmatpush1.msra.mxu0 0.0
        %312 = vmatprep.subr.mxu0 0.0
        %313 = vmatpush1.msra.mxu0 0.0
        %314 = vmatprep.subr.mxu0 0.0
        %315 = vmatpush1.msra.mxu0 0.0
        %316 = vmatprep.subr.mxu0 0.0
        %317 = vmatpush1.msra.mxu0 0.0
        %318 = vmatprep.subr.mxu0 0.0
        %319 = vmatpush1.msra.mxu0 0.0
        %320 = vmatprep.subr.mxu0 0.0
        %321 = vmatpush1.msra.mxu0 0.0
        %322 = vmatprep.subr.mxu0 0.0
        %323 = vmatpush1.msra.mxu0 0.0
        %324 = vmatprep.subr.mxu0 0.0
        %325 = vmatpush1.msra.mxu0 0.0
        %326 = vmatprep.subr.mxu0 0.0
        %327 = vmatpush1.msra.mxu0 0.0
        %328 = vmatprep.subr.mxu0 0.0
        %329 = vmatpush1.msra.mxu0 0.0
        %330 = vmatprep.subr.mxu0 0.0
        %331 = vmatpush1.msra.mxu0 0.0
        %332 = vmatprep.subr.mxu0 0.0
        %333 = vmatpush1.msra.mxu0 0.0
        %334 = vmatprep.mubr.f32.mxu0 0.0
        %335 = vmatmul.mubr.f32.gmra.mrb[0].mxu0 %v268
        %v336 = vpop.f32.mrb[0].mxu0
        %v337 = vadd.f32 0.0, %v336
        %v338 = vpop.f32.mrb[0].mxu0
        %339 = vdwg.mxu0
        %v340 = vadd.f32 %v265, %v337
        %vm341 = vcmask 261120
        %342 = vst.msk [vmem:[%s222] sm:$0xff] %vm341, %v340
        %s343 = sand.u32 %s106, 1
        %s344 = scalar_lea.sflag [#allocation4], %s343
        %s345 = sand.u32 %s106, 1
        %s346 = smul.addr %s345, 8
        %s347 = scalar_lea.vmem [#allocation7], %s346
        // Predicated region
        $region41: #{tpu_custom_call.1} parent=27 // pred_check
          %p348 = pneg %p116
        $region42: #{tpu_custom_call.1} parent=27 // pred_check_branch
          %350 = sbr.rel (%p348) target = $region44
        $region43: #{tpu_custom_call.1} parent=27 // pred_region
          %s352 = ssub.s32 128, 128
          %353 = vsyncadd %s344, %s352
          %s354 = smul.addr %s26, 128
          %s355 = scalar_lea.hbm %s2, %s354
          %s357 = sshll.u32 %s347, 4
          %s358 = int_to_ptr.vmem [resolvable:$true] %s357
          %360 = dma.vmem_to_hbm [thread:$0]  %s358, 128, %s355, %s344
        $region44: #{tpu_custom_call.1} parent=27 // pred_fallthru
          _
      $region28: #{tpu_custom_call.1} parent=5 // pred_fallthru
        _
      %p361 = scmp.le.s32.totalorder 2, %s17
      // Predicated region
      $region45: #{tpu_custom_call.1} parent=5 // pred_check
        %p362 = pneg %p361
      $region46: #{tpu_custom_call.1} parent=5 // pred_check_branch
        %364 = sbr.rel (%p362) target = $region48
      $region47: #{tpu_custom_call.1} parent=5 // pred_region
        %s365 = ssub.s32 %s17, 2
        // Predicated region
        $region49: #{tpu_custom_call.1} parent=47 // pred_check
          %p366 = pneg %p122
        $region50: #{tpu_custom_call.1} parent=47 // pred_check_branch
          %368 = sbr.rel (%p366) target = $region52
        $region51: #{tpu_custom_call.1} parent=47 // pred_region
          %s369 = sand.u32 %s107, 1
          %s370 = scalar_lea.sflag [#allocation4], %s369
          %s371 = sand.u32 %s107, 1
          %s372 = smul.addr %s371, 8
          %s373 = scalar_lea.vmem [#allocation7], %s372
          %374 = dma.done %s370, 128
        $region52: #{tpu_custom_call.1} parent=47 // pred_fallthru
          _
      $region48: #{tpu_custom_call.1} parent=5 // pred_fallthru
        _
    $region6: #{tpu_custom_call.1} parent=1 // loop_footer
      %s21 = sadd.s32 1, %s17
    $region7: #{tpu_custom_call.1} parent=1 // loop_footer_branch
      %16 = sbr.rel target = $region3
    $region8: #{tpu_custom_call.1} parent=1 // loop_exit
      _
    %375 = vsyncpa [#allocation3], 1
    %s376 = scalar_lea.sflag [#allocation3], 1
    %377 = vsyncpa %s376, 1
    %378 = vsyncpa [#allocation6], 1
    %s379 = scalar_lea.sflag [#allocation6], 1
    %380 = vsyncpa %s379, 1
    %381 = vsyncpa [#allocation4], 1
    %s382 = scalar_lea.sflag [#allocation4], 1
    %383 = vsyncpa %s382, 1

</llo_original>
